<compile_context>
chip_gen: v5e
topology: v5e:2x2
jax: 0.10.0
libtpu: 0.0.40
codegen_flags: <defaults>
</compile_context>

<pallas_src>
import functools

import jax
import jax.numpy as jnp
from jax.experimental import pallas as pl
from jax.experimental.pallas import tpu as pltpu


def _round_up(x: int, m: int) -> int:
    return (x + m - 1) // m * m


def autorec_kernel(x_ref, w1t_ref, b1_ref, w2t_ref, b2_ref, o_ref, h_ref):
    # Encoder: run once per batch tile (first column step); keep f32 result in
    # VMEM scratch and reuse it for every decoder column tile.
    @pl.when(pl.program_id(1) == 0)
    def _():
        pre = jnp.dot(x_ref[...], w1t_ref[...],
                      preferred_element_type=jnp.float32)
        h_ref[...] = jax.nn.sigmoid(pre + b1_ref[...])

    # Decoder for this (batch tile, column tile): h @ W2^T_tile + b2_tile.
    out = jnp.dot(h_ref[...].astype(w2t_ref.dtype), w2t_ref[...],
                  preferred_element_type=jnp.float32)
    o_ref[...] = (out + b2_ref[...]).astype(o_ref.dtype)


@functools.partial(jax.jit, static_argnames=("block_b", "block_n"))
def autorec_forward(x, w1, b1, w2, b2, *, block_b=256, block_n=2048):
    """x: [B, num_items]; w1: [hidden, num_items]; b1: [hidden];
    w2: [num_items, hidden]; b2: [num_items].  Returns [B, num_items]."""
    B, num_items = x.shape
    hidden = w1.shape[0]
    out_dtype = x.dtype
    out_bytes = jnp.dtype(out_dtype).itemsize

    # Pad hidden to MXU-native contraction depth (multiple of 128).
    hidden_p = _round_up(max(hidden, 1), 128)

    # Tile sizes: (8,128)-aligned batch tiles, lane-dense output tiles.
    tb = min(_round_up(block_b, 8), _round_up(B, 8))
    tn = num_items if num_items <= block_n else _round_up(block_n, 128)
    b_pad = _round_up(B, tb)

    # Glue (done once under jit): transpose weights to (in, out), cast to bf16,
    # zero-pad the hidden dim; biases stay f32 rows.
    w1t = jnp.zeros((num_items, hidden_p), jnp.bfloat16)
    w1t = w1t.at[:, :hidden].set(w1.T.astype(jnp.bfloat16))
    w2t = jnp.zeros((hidden_p, num_items), jnp.bfloat16)
    w2t = w2t.at[:hidden, :].set(w2.T.astype(jnp.bfloat16))
    b1r = jnp.zeros((1, hidden_p), jnp.float32)
    b1r = b1r.at[:, :hidden].set(b1.astype(jnp.float32)[None, :])
    b2r = b2.astype(jnp.float32).reshape(1, num_items)

    xb = x.astype(jnp.bfloat16)
    if b_pad != B:
        xb = jnp.zeros((b_pad, num_items), jnp.bfloat16).at[:B, :].set(xb)

    grid = (b_pad // tb, pl.cdiv(num_items, tn))

    # Advisory cost estimate for the XLA scheduler.
    cost = pl.CostEstimate(
        flops=4 * b_pad * num_items * hidden_p,          # encoder + decoder
        transcendentals=b_pad * hidden_p,                # sigmoid exp
        bytes_accessed=(xb.size * 2 + w1t.size * 2 + w2t.size * 2
                        + b1r.size * 4 + b2r.size * 4
                        + b_pad * num_items * out_bytes),
    )
    # VMEM budget: resident W1^T/b1 + double-buffered x / W2^T-tile / out-tile
    # + f32 encoder scratch, with headroom.
    vmem_bytes = (w1t.size * 2 + b1r.size * 4
                  + 2 * tb * num_items * 2
                  + 2 * (hidden_p * tn * 2 + tn * 4)
                  + 2 * tb * tn * out_bytes
                  + tb * hidden_p * 4)
    vmem_limit = min(max(vmem_bytes * 3 // 2 + (1 << 20), 32 << 20), 96 << 20)

    out = pl.pallas_call(
        autorec_kernel,
        out_shape=jax.ShapeDtypeStruct((b_pad, num_items), out_dtype),
        grid_spec=pltpu.PrefetchScalarGridSpec(
            num_scalar_prefetch=0,
            grid=grid,
            in_specs=[
                pl.BlockSpec((tb, num_items), lambda i, j: (i, 0)),        # x
                pl.BlockSpec((num_items, hidden_p), lambda i, j: (0, 0)),  # W1^T (resident)
                pl.BlockSpec((1, hidden_p), lambda i, j: (0, 0)),          # b1 (resident)
                pl.BlockSpec((hidden_p, tn), lambda i, j: (0, j)),         # W2^T tile
                pl.BlockSpec((1, tn), lambda i, j: (0, j)),                # b2 tile
            ],
            out_specs=pl.BlockSpec((tb, tn), lambda i, j: (i, j)),
            scratch_shapes=[pltpu.VMEM((tb, hidden_p), jnp.float32)],      # encoder h
        ),
        compiler_params=pltpu.CompilerParams(
            dimension_semantics=("parallel", "arbitrary"),
            vmem_limit_bytes=vmem_limit,
        ),
        cost_estimate=cost,
    )(xb, w1t, b1r, w2t, b2r)

    return out[:B, :] if b_pad != B else out


if __name__ == "__main__":
    # Small deterministic problem consistent with the module's forward:
    # num_users rows of a num_items-wide rating vector.
    num_users = 8
    num_items = 256
    hidden_units = 32

    key = jax.random.PRNGKey(0)
    k_x, k_w1, k_b1, k_w2, k_b2 = jax.random.split(key, 5)

    x = jax.random.uniform(k_x, (num_users, num_items), dtype=jnp.float32)

    # PyTorch-style init: U(-1/sqrt(fan_in), 1/sqrt(fan_in)).
    bound1 = 1.0 / float(num_items) ** 0.5
    w1 = jax.random.uniform(k_w1, (hidden_units, num_items), jnp.float32,
                            -bound1, bound1)
    b1 = jax.random.uniform(k_b1, (hidden_units,), jnp.float32, -bound1, bound1)

    bound2 = 1.0 / float(hidden_units) ** 0.5
    w2 = jax.random.uniform(k_w2, (num_items, hidden_units), jnp.float32,
                            -bound2, bound2)
    b2 = jax.random.uniform(k_b2, (num_items,), jnp.float32, -bound2, bound2)

    out = autorec_forward(x, w1, b1, w2, b2)
    out = jax.block_until_ready(out)

    # Pure-JAX f32 reference; bf16 inputs in the kernel -> loosened tolerance.
    ref = jax.nn.sigmoid(x @ w1.T + b1) @ w2.T + b2
    assert out.shape == (num_users, num_items)
    max_err = float(jnp.max(jnp.abs(out - ref)))
    assert jnp.allclose(out, ref, atol=2e-2, rtol=2e-2), f"max abs err {max_err}"

    print("KERNEL_OK")
</pallas_src>

<mosaic_0001>
module attributes {stable_mosaic.version = 11 : i64} {
  func.func @autorec_kernel(%arg0: i32, %arg1: i32, %arg2: memref<8x256xbf16, #tpu.memory_space<vmem>>, %arg3: memref<256x128xbf16, #tpu.memory_space<vmem>>, %arg4: memref<1x128xf32, #tpu.memory_space<vmem>>, %arg5: memref<128x256xbf16, #tpu.memory_space<vmem>>, %arg6: memref<1x256xf32, #tpu.memory_space<vmem>>, %arg7: memref<8x256xf32, #tpu.memory_space<vmem>>, %arg8: memref<8x128xf32, #tpu.memory_space<vmem>>) attributes {dimension_semantics = [#tpu.dimension_semantics<parallel>, #tpu.dimension_semantics<arbitrary>], iteration_bounds = array<i64: 1, 1>, scalar_prefetch = 0 : i64, scratch_operands = 1 : i64, tpu.core_type = #tpu.core_type<tc>, window_params = [{transform_indices = @transform_0, window_bounds = array<i64: 8, 256>}, {pipeline_mode = #tpu.pipeline_mode<synchronous>, transform_indices = @transform_1, window_bounds = array<i64: 256, 128>}, {pipeline_mode = #tpu.pipeline_mode<synchronous>, transform_indices = @transform_2, window_bounds = array<i64: 1, 128>}, {transform_indices = @transform_3, window_bounds = array<i64: 128, 256>}, {transform_indices = @transform_4, window_bounds = array<i64: 1, 256>}, {transform_indices = @transform_5, window_bounds = array<i64: 8, 256>}]} {
    %c0_i32 = arith.constant 0 : i32
    %0 = arith.cmpi eq, %arg1, %c0_i32 : i32
    %1 = arith.extui %0 : i1 to i32
    %c0_i32_0 = arith.constant 0 : i32
    %2 = arith.cmpi ne, %1, %c0_i32_0 : i32
    scf.if %2 {
      %c0_8 = arith.constant 0 : index
      %c0_9 = arith.constant 0 : index
      %11 = vector.load %arg2[%c0_8, %c0_9] : memref<8x256xbf16, #tpu.memory_space<vmem>>, vector<8x256xbf16>
      %c0_10 = arith.constant 0 : index
      %c0_11 = arith.constant 0 : index
      %12 = vector.load %arg3[%c0_10, %c0_11] : memref<256x128xbf16, #tpu.memory_space<vmem>>, vector<256x128xbf16>
      %cst_12 = arith.constant dense<0.000000e+00> : vector<8x128xf32>
      %13 = tpu.matmul %11, %12, %cst_12 {dimension_numbers = #tpu.dot_dimension_numbers<[1], [0], [0], [1], [0, 0, 1, 1], [], []>} : vector<8x256xbf16>, vector<256x128xbf16>, vector<8x128xf32> -> vector<8x128xf32>
      %c0_13 = arith.constant 0 : index
      %c0_14 = arith.constant 0 : index
      %14 = vector.load %arg4[%c0_13, %c0_14] : memref<1x128xf32, #tpu.memory_space<vmem>>, vector<1x128xf32>
      %15 = vector.broadcast %14 : vector<1x128xf32> to vector<8x128xf32>
      %16 = arith.addf %13, %15 : vector<8x128xf32>
      %17 = arith.negf %16 : vector<8x128xf32>
      %18 = math.exp %17 : vector<8x128xf32>
      %cst_15 = arith.constant 1.000000e+00 : f32
      %19 = vector.broadcast %cst_15 : f32 to vector<8x128xf32>
      %20 = arith.addf %19, %18 : vector<8x128xf32>
      %21 = arith.divf %19, %20 : vector<8x128xf32>
      %c0_16 = arith.constant 0 : index
      %c0_17 = arith.constant 0 : index
      %22 = vector.load %arg8[%c0_16, %c0_17] : memref<8x128xf32, #tpu.memory_space<vmem>>, vector<8x128xf32>
      tpu.vector_store %arg8[%c0_16, %c0_17], %21 {strides = array<i32>} : memref<8x128xf32, #tpu.memory_space<vmem>>, vector<8x128xf32>,
    } else {
    }
    %c0 = arith.constant 0 : index
    %c0_1 = arith.constant 0 : index
    %3 = vector.load %arg8[%c0, %c0_1] : memref<8x128xf32, #tpu.memory_space<vmem>>, vector<8x128xf32>
    %4 = arith.truncf %3 : vector<8x128xf32> to vector<8x128xbf16>
    %c0_2 = arith.constant 0 : index
    %c0_3 = arith.constant 0 : index
    %5 = vector.load %arg5[%c0_2, %c0_3] : memref<128x256xbf16, #tpu.memory_space<vmem>>, vector<128x256xbf16>
    %cst = arith.constant dense<0.000000e+00> : vector<8x256xf32>
    %6 = tpu.matmul %4, %5, %cst {dimension_numbers = #tpu.dot_dimension_numbers<[1], [0], [0], [1], [0, 0, 1, 1], [], []>} : vector<8x128xbf16>, vector<128x256xbf16>, vector<8x256xf32> -> vector<8x256xf32>
    %c0_4 = arith.constant 0 : index
    %c0_5 = arith.constant 0 : index
    %7 = vector.load %arg6[%c0_4, %c0_5] : memref<1x256xf32, #tpu.memory_space<vmem>>, vector<1x256xf32>
    %8 = vector.broadcast %7 : vector<1x256xf32> to vector<8x256xf32>
    %9 = arith.addf %6, %8 : vector<8x256xf32>
    %c0_6 = arith.constant 0 : index
    %c0_7 = arith.constant 0 : index
    %10 = vector.load %arg7[%c0_6, %c0_7] : memref<8x256xf32, #tpu.memory_space<vmem>>, vector<8x256xf32>
    tpu.vector_store %arg7[%c0_6, %c0_7], %9 {strides = array<i32>} : memref<8x256xf32, #tpu.memory_space<vmem>>, vector<8x256xf32>,
    return
  }
  func.func @transform_0(%arg0: i32, %arg1: i32) -> (i32, i32) {
    %c0_i32 = arith.constant 0 : i32
    %c0_i32_0 = arith.constant 0 : i32
    return %arg0, %c0_i32 : i32, i32
  }
  func.func @transform_1(%arg0: i32, %arg1: i32) -> (i32, i32) {
    %c0_i32 = arith.constant 0 : i32
    %c0_i32_0 = arith.constant 0 : i32
    %c0_i32_1 = arith.constant 0 : i32
    return %c0_i32, %c0_i32_0 : i32, i32
  }
  func.func @transform_2(%arg0: i32, %arg1: i32) -> (i32, i32) {
    %c0_i32 = arith.constant 0 : i32
    %c0_i32_0 = arith.constant 0 : i32
    %c0_i32_1 = arith.constant 0 : i32
    return %c0_i32, %c0_i32_0 : i32, i32
  }
  func.func @transform_3(%arg0: i32, %arg1: i32) -> (i32, i32) {
    %c0_i32 = arith.constant 0 : i32
    %c0_i32_0 = arith.constant 0 : i32
    return %c0_i32, %arg1 : i32, i32
  }
  func.func @transform_4(%arg0: i32, %arg1: i32) -> (i32, i32) {
    %c0_i32 = arith.constant 0 : i32
    %c0_i32_0 = arith.constant 0 : i32
    return %c0_i32, %arg1 : i32, i32
  }
  func.func @transform_5(%arg0: i32, %arg1: i32) -> (i32, i32) {
    %c0_i32 = arith.constant 0 : i32
    return %arg0, %arg1 : i32, i32
  }
}

</mosaic_0001>

<llo_original>
// kernel: autorec_forward.1
$region0: #{autorec_forward.1}
  #allocation0 [shape = 'u32[]', space=smem, size = 0x4, offset = 0x4, fixed_abs, tag = 'smem constant byte address 0x4 - core index']
  #allocation1 [shape = 'u32[72,128]{1,0:T(1,128)}', space=vmem, size = 0x9000, scoped, tag = 'internal scratch']
  #allocation2 [shape = 'f32[8,128]{1,0:T(8,128)}', space=vmem, size = 0x1000, scoped, tag = 'scratch operand']
  %s0 = inlined_call_operand.vmem [shape: bf16[8,256], index: 0, kind: input, shape index: {}]
  %s1 = inlined_call_operand.vmem [shape: bf16[256,128], index: 1, kind: input, shape index: {}]
  %s2 = inlined_call_operand.vmem [shape: f32[1,128], index: 2, kind: input, shape index: {}]
  %s3 = inlined_call_operand.vmem [shape: bf16[128,256], index: 3, kind: input, shape index: {}]
  %s4 = inlined_call_operand.vmem [shape: f32[1,256], index: 4, kind: input, shape index: {}]
  %s5 = inlined_call_operand.hbm [shape: f32[8,256], index: 5, kind: output, shape index: {}]
  %s6 = sld [smem:[#allocation0]]
  $region34: #{autorec_forward.1} parent=0
    _
  %s8 = ssub.s32 1, %s6
  %s9 = scalar_select 0, %s8, %s6
  $region1: #{autorec_forward.1} parent=0
    #allocation3 [shape = 'u8[8192]{0}', space=vmem, size = 0x2000, scoped, tag = 'output window, operand 0, single buffered']
    #allocation4 [shape = 's32[1]{0}', space=sflag, size = 0x4, scoped, tag = 'scoped memory for autorec_forward.1']
    %10 = vsyncpa [#allocation4], 0
    // Predicated region
    $region2: #{autorec_forward.1} parent=1 // pred_check
      _
    $region3: #{autorec_forward.1} parent=1 // pred_check_branch
      %12 = sbr.rel (0) target = $region5
    $region4: #{autorec_forward.1} parent=1 // pred_region
      _
    $region5: #{autorec_forward.1} parent=1 // pred_fallthru
      _
    // Predicated region
    $region6: #{autorec_forward.1} parent=1 // pred_check
      _
    $region7: #{autorec_forward.1} parent=1 // pred_check_branch
      %14 = sbr.rel (0) target = $region9
    $region8: #{autorec_forward.1} parent=1 // pred_region
      _
    $region9: #{autorec_forward.1} parent=1 // pred_fallthru
      _
    // Predicated region
    $region10: #{autorec_forward.1} parent=1 // pred_check
      _
    $region11: #{autorec_forward.1} parent=1 // pred_check_branch
      %16 = sbr.rel (0) target = $region13
    $region12: #{autorec_forward.1} parent=1 // pred_region
      _
    $region13: #{autorec_forward.1} parent=1 // pred_fallthru
      _
    // Predicated region
    $region14: #{autorec_forward.1} parent=1 // pred_check
      _
    $region15: #{autorec_forward.1} parent=1 // pred_check_branch
      %18 = sbr.rel (0) target = $region17
    $region16: #{autorec_forward.1} parent=1 // pred_region
      _
    $region17: #{autorec_forward.1} parent=1 // pred_fallthru
      _
    // Predicated region
    $region18: #{autorec_forward.1} parent=1 // pred_check
      _
    $region19: #{autorec_forward.1} parent=1 // pred_check_branch
      %20 = sbr.rel (0) target = $region21
    $region20: #{autorec_forward.1} parent=1 // pred_region
      _
    $region21: #{autorec_forward.1} parent=1 // pred_fallthru
      _
    %p21 = scmp.eq.s32.totalorder 0, 0
    // Predicated region
    $region22: #{autorec_forward.1} parent=1 // pred_check
      %p22 = pneg %p21
    $region23: #{autorec_forward.1} parent=1 // pred_check_branch
      %24 = sbr.rel (%p22) target = $region25
    $region24: #{autorec_forward.1} parent=1 // pred_region
      %v25 = vld [vmem:[%s0] sm:$0xff]
      %v26 = vld [vmem:[%s1] sm:$0xf]
      %v27 = vld [vmem:[%s1 + $0x4] sm:$0xf]
      %v28 = vld [vmem:[%s1 + $0x8] sm:$0xf]
      %v29 = vld [vmem:[%s1 + $0xc] sm:$0xf]
      %v30 = vld [vmem:[%s1 + $0x10] sm:$0xf]
      %v31 = vld [vmem:[%s1 + $0x14] sm:$0xf]
      %v32 = vld [vmem:[%s1 + $0x18] sm:$0xf]
      %v33 = vld [vmem:[%s1 + $0x1c] sm:$0xf]
      %v34 = vld [vmem:[%s1 + $0x20] sm:$0xf]
      %v35 = vld [vmem:[%s1 + $0x24] sm:$0xf]
      %v36 = vld [vmem:[%s1 + $0x28] sm:$0xf]
      %v37 = vld [vmem:[%s1 + $0x2c] sm:$0xf]
      %v38 = vld [vmem:[%s1 + $0x30] sm:$0xf]
      %v39 = vld [vmem:[%s1 + $0x34] sm:$0xf]
      %v40 = vld [vmem:[%s1 + $0x38] sm:$0xf]
      %v41 = vld [vmem:[%s1 + $0x3c] sm:$0xf]
      %v42 = vld [vmem:[%s1 + $0x40] sm:$0xf]
      %v43 = vld [vmem:[%s1 + $0x44] sm:$0xf]
      %v44 = vld [vmem:[%s1 + $0x48] sm:$0xf]
      %v45 = vld [vmem:[%s1 + $0x4c] sm:$0xf]
      %v46 = vld [vmem:[%s1 + $0x50] sm:$0xf]
      %v47 = vld [vmem:[%s1 + $0x54] sm:$0xf]
      %v48 = vld [vmem:[%s1 + $0x58] sm:$0xf]
      %v49 = vld [vmem:[%s1 + $0x5c] sm:$0xf]
      %v50 = vld [vmem:[%s1 + $0x60] sm:$0xf]
      %v51 = vld [vmem:[%s1 + $0x64] sm:$0xf]
      %v52 = vld [vmem:[%s1 + $0x68] sm:$0xf]
      %v53 = vld [vmem:[%s1 + $0x6c] sm:$0xf]
      %v54 = vld [vmem:[%s1 + $0x70] sm:$0xf]
      %v55 = vld [vmem:[%s1 + $0x74] sm:$0xf]
      %v56 = vld [vmem:[%s1 + $0x78] sm:$0xf]
      %v57 = vld [vmem:[%s1 + $0x7c] sm:$0xf]
      %v58 = vld [vmem:[%s2] sm:$0x1]
      %v60 = vperm.slane %v58, 0
      %v63 = vunpack.c.l.b16 %v25
      %v64 = vunpack.c.h.b16 %v25
      %v65 = vpack.c.b16 %v63, %v63
      %v66 = vpack.c.b16 %v64, %v64
      %v101 = vunpack.c.l.b16 %v26
      %v102 = vunpack.c.l.b16 %v27
      %v103 = vunpack.c.l.b16 %v28
      %v104 = vunpack.c.l.b16 %v29
      %v105 = vunpack.c.l.b16 %v30
      %v106 = vunpack.c.l.b16 %v31
      %v107 = vunpack.c.l.b16 %v32
      %v108 = vunpack.c.l.b16 %v33
      %v109 = vunpack.c.l.b16 %v34
      %v110 = vunpack.c.l.b16 %v35
      %v111 = vunpack.c.l.b16 %v36
      %v112 = vunpack.c.l.b16 %v37
      %v113 = vunpack.c.l.b16 %v38
      %v114 = vunpack.c.l.b16 %v39
      %v115 = vunpack.c.l.b16 %v40
      %v116 = vunpack.c.l.b16 %v41
      %v117 = vunpack.c.l.b16 %v42
      %v118 = vunpack.c.l.b16 %v43
      %v119 = vunpack.c.l.b16 %v44
      %v120 = vunpack.c.l.b16 %v45
      %v121 = vunpack.c.l.b16 %v46
      %v122 = vunpack.c.l.b16 %v47
      %v123 = vunpack.c.l.b16 %v48
      %v124 = vunpack.c.l.b16 %v49
      %v125 = vunpack.c.l.b16 %v50
      %v126 = vunpack.c.l.b16 %v51
      %v127 = vunpack.c.l.b16 %v52
      %v128 = vunpack.c.l.b16 %v53
      %v129 = vunpack.c.l.b16 %v54
      %v130 = vunpack.c.l.b16 %v55
      %v131 = vunpack.c.l.b16 %v56
      %v132 = vunpack.c.l.b16 %v57
      %v133 = vpack.c.b16 %v102, %v101
      %v134 = vpack.c.b16 %v104, %v103
      %v135 = vpack.c.b16 %v106, %v105
      %v136 = vpack.c.b16 %v108, %v107
      %v137 = vpack.c.b16 %v110, %v109
      %v138 = vpack.c.b16 %v112, %v111
      %v139 = vpack.c.b16 %v114, %v113
      %v140 = vpack.c.b16 %v116, %v115
      %v141 = vpack.c.b16 %v118, %v117
      %v142 = vpack.c.b16 %v120, %v119
      %v143 = vpack.c.b16 %v122, %v121
      %v144 = vpack.c.b16 %v124, %v123
      %v145 = vpack.c.b16 %v126, %v125
      %v146 = vpack.c.b16 %v128, %v127
      %v147 = vpack.c.b16 %v130, %v129
      %v148 = vpack.c.b16 %v132, %v131
      %165 = vmatpush.bf16.msra.mxu0 %v140
      %166 = vmatpush.bf16.msra.mxu0 %v139
      %167 = vmatpush.bf16.msra.mxu0 %v138
      %168 = vmatpush.bf16.msra.mxu0 %v137
      %169 = vmatpush.bf16.msra.mxu0 %v136
      %170 = vmatpush.bf16.msra.mxu0 %v135
      %171 = vmatpush.bf16.msra.mxu0 %v134
      %172 = vmatpush.bf16.msra.mxu0 %v133
      %173 = vmatmul.bf16.gmra.mxu0 %v65
      %v174 = vpop.f32.mrf.mxu0
      %v175 = vadd.f32 %v60, %v174
      %v176 = vpop.f32.mrf.mxu0
      %177 = vdwg.mxu0
      %178 = vmatpush.bf16.msra.mxu0 %v148
      %179 = vmatpush.bf16.msra.mxu0 %v147
      %180 = vmatpush.bf16.msra.mxu0 %v146
      %181 = vmatpush.bf16.msra.mxu0 %v145
      %182 = vmatpush.bf16.msra.mxu0 %v144
      %183 = vmatpush.bf16.msra.mxu0 %v143
      %184 = vmatpush.bf16.msra.mxu0 %v142
      %185 = vmatpush.bf16.msra.mxu0 %v141
      %186 = vmatmul.bf16.gmra.mxu0 %v66
      %v187 = vpop.f32.mrf.mxu0
      %v188 = vadd.f32 %v175, %v187
      %v189 = vpop.f32.mrf.mxu0
      %190 = vdwg.mxu0
      %v191 = vxor.u32 %v188, 2147483648
      %v192 = vmul.f32 %v191, 1.442695
      %v193 = vpow.pop %v192
      %v194 = vadd.f32 %v193, 1.0
      %v195 = vrcp.pop %v194
      %v196 = vmul.f32 %v194, %v195
      %v197 = vsub.f32 1.0, %v196
      %v198 = vmul.f32 %v195, %v197
      %v199 = vadd.f32 %v195, %v198
      %vm200 = vweird.f32 %v194
      %vm201 = vweird.f32 %v195
      %vm202 = vmor %vm200, %vm201
      %v203 = vsel %vm202, %v195, %v199
      %v204 = vand.u32 2147483647, %v194
      %vm205 = vcmp.eq.f32.partialorder %v204, 8.507059e+37
      %v206 = vand.u32 %v194, 2147483648
      %v207 = vor.u32 1.1754944e-38, %v206
      %v208 = vsel %vm205, %v207, %v203
      %v209 = vmul.f32 1.0, %v208
      %210 = vst [vmem:[#allocation2] sm:$0xff] %v209
    $region25: #{autorec_forward.1} parent=1 // pred_fallthru
      _
    %v211 = vld [vmem:[#allocation2] sm:$0xff]
    %v212 = vpack.c.bf16 %v211, %v211
    %v213 = vld [vmem:[%s3] sm:$0xff]
    %v214 = vld [vmem:[%s3 + $0x8] sm:$0xff]
    %v215 = vld [vmem:[%s3 + $0x10] sm:$0xff]
    %v216 = vld [vmem:[%s3 + $0x18] sm:$0xff]
    %v217 = vld [vmem:[%s3 + $0x20] sm:$0xff]
    %v218 = vld [vmem:[%s3 + $0x28] sm:$0xff]
    %v219 = vld [vmem:[%s3 + $0x30] sm:$0xff]
    %v220 = vld [vmem:[%s3 + $0x38] sm:$0xff]
    %v221 = vld [vmem:[%s3 + $0x40] sm:$0xff]
    %v222 = vld [vmem:[%s3 + $0x48] sm:$0xff]
    %v223 = vld [vmem:[%s3 + $0x50] sm:$0xff]
    %v224 = vld [vmem:[%s3 + $0x58] sm:$0xff]
    %v225 = vld [vmem:[%s3 + $0x60] sm:$0xff]
    %v226 = vld [vmem:[%s3 + $0x68] sm:$0xff]
    %v227 = vld [vmem:[%s3 + $0x70] sm:$0xff]
    %v228 = vld [vmem:[%s3 + $0x78] sm:$0xff]
    %v229 = vld [vmem:[%s4] sm:$0x3]
    %v231 = vperm.slane %v229, 0
    %v232 = vperm.slane %v229, 1
    %v251 = vunpack.c.l.b16 %v213
    %v252 = vunpack.c.h.b16 %v213
    %v253 = vunpack.c.l.b16 %v214
    %v254 = vunpack.c.h.b16 %v214
    %v255 = vunpack.c.l.b16 %v215
    %v256 = vunpack.c.h.b16 %v215
    %v257 = vunpack.c.l.b16 %v216
    %v258 = vunpack.c.h.b16 %v216
    %v259 = vunpack.c.l.b16 %v217
    %v260 = vunpack.c.h.b16 %v217
    %v261 = vunpack.c.l.b16 %v218
    %v262 = vunpack.c.h.b16 %v218
    %v263 = vunpack.c.l.b16 %v219
    %v264 = vunpack.c.h.b16 %v219
    %v265 = vunpack.c.l.b16 %v220
    %v266 = vunpack.c.h.b16 %v220
    %v267 = vunpack.c.l.b16 %v221
    %v268 = vunpack.c.h.b16 %v221
    %v269 = vunpack.c.l.b16 %v222
    %v270 = vunpack.c.h.b16 %v222
    %v271 = vunpack.c.l.b16 %v223
    %v272 = vunpack.c.h.b16 %v223
    %v273 = vunpack.c.l.b16 %v224
    %v274 = vunpack.c.h.b16 %v224
    %v275 = vunpack.c.l.b16 %v225
    %v276 = vunpack.c.h.b16 %v225
    %v277 = vunpack.c.l.b16 %v226
    %v278 = vunpack.c.h.b16 %v226
    %v279 = vunpack.c.l.b16 %v227
    %v280 = vunpack.c.h.b16 %v227
    %v281 = vunpack.c.l.b16 %v228
    %v282 = vunpack.c.h.b16 %v228
    %v283 = vpack.c.b16 %v253, %v251
    %v284 = vpack.c.b16 %v254, %v252
    %v285 = vpack.c.b16 %v257, %v255
    %v286 = vpack.c.b16 %v258, %v256
    %v287 = vpack.c.b16 %v261, %v259
    %v288 = vpack.c.b16 %v262, %v260
    %v289 = vpack.c.b16 %v265, %v263
    %v290 = vpack.c.b16 %v266, %v264
    %v291 = vpack.c.b16 %v269, %v267
    %v292 = vpack.c.b16 %v270, %v268
    %v293 = vpack.c.b16 %v273, %v271
    %v294 = vpack.c.b16 %v274, %v272
    %v295 = vpack.c.b16 %v277, %v275
    %v296 = vpack.c.b16 %v278, %v276
    %v297 = vpack.c.b16 %v281, %v279
    %v298 = vpack.c.b16 %v282, %v280
    %315 = vmatpush.bf16.msra.mxu0 %v297
    %316 = vmatpush.bf16.msra.mxu0 %v295
    %317 = vmatpush.bf16.msra.mxu0 %v293
    %318 = vmatpush.bf16.msra.mxu0 %v291
    %319 = vmatpush.bf16.msra.mxu0 %v289
    %320 = vmatpush.bf16.msra.mxu0 %v287
    %321 = vmatpush.bf16.msra.mxu0 %v285
    %322 = vmatpush.bf16.msra.mxu0 %v283
    %323 = vmatmul.bf16.gmra.mxu0 %v212
    %v324 = vpop.f32.mrf.mxu0
    %v325 = vadd.f32 %v231, %v324
    %v326 = vpop.f32.mrf.mxu0
    %327 = vdwg.mxu0
    %328 = vmatpush.bf16.msra.mxu0 %v298
    %329 = vmatpush.bf16.msra.mxu0 %v296
    %330 = vmatpush.bf16.msra.mxu0 %v294
    %331 = vmatpush.bf16.msra.mxu0 %v292
    %332 = vmatpush.bf16.msra.mxu0 %v290
    %333 = vmatpush.bf16.msra.mxu0 %v288
    %334 = vmatpush.bf16.msra.mxu0 %v286
    %335 = vmatpush.bf16.msra.mxu0 %v284
    %336 = vmatmul.bf16.gmra.mxu0 %v212
    %v337 = vpop.f32.mrf.mxu0
    %v338 = vadd.f32 %v232, %v337
    %v339 = vpop.f32.mrf.mxu0
    %340 = vdwg.mxu0
    %341 = vst [vmem:[#allocation3] sm:$0xff] %v325
    %342 = vst [vmem:[#allocation3 + $0x8] sm:$0xff] %v338
    // Predicated region
    $region26: #{autorec_forward.1} parent=1 // pred_check
      _
    $region27: #{autorec_forward.1} parent=1 // pred_check_branch
      %344 = sbr.rel (0) target = $region29
    $region28: #{autorec_forward.1} parent=1 // pred_region
      %346 = vsyncadd [#allocation4], 0
      %s348 = sshll.u32 [#allocation3], 4
      %s349 = int_to_ptr.vmem [resolvable:$true] %s348
      %s350 = sshll.u32 %s5, 4
      %s351 = int_to_ptr.hbm [resolvable:$true] %s350
      %353 = dma.vmem_to_hbm [thread:$0]  %s349, 256, %s351, [#allocation4]
    $region29: #{autorec_forward.1} parent=1 // pred_fallthru
      _
    // Predicated region
    $region30: #{autorec_forward.1} parent=1 // pred_check
      _
    $region31: #{autorec_forward.1} parent=1 // pred_check_branch
      %355 = sbr.rel (0) target = $region33
    $region32: #{autorec_forward.1} parent=1 // pred_region
      %357 = dma.done [#allocation4], 256
    $region33: #{autorec_forward.1} parent=1 // pred_fallthru
      _
    %358 = vsyncpa [#allocation4], 1

</llo_original>
